<compile_context>
chip_gen: v6e
topology: v6e:2x2x1
jax: 0.10.0
libtpu: 0.0.40
codegen_flags: <defaults>
</compile_context>

<pallas_src>
import jax
import jax.numpy as jnp
from jax.experimental import pallas as pl
from jax.experimental.pallas import tpu as pltpu

HIDDEN = 128
LANE = 128
SUBLANE = 8


def _round_up(n: int, m: int) -> int:
    return ((n + m - 1) // m) * m


def _cdiv(a: int, b: int) -> int:
    return (a + b - 1) // b


def mlp_kernel(x_ref, w1_ref, b1_ref, w2_ref, b2_ref, w3_ref, b3_ref, o_ref):
    # Layer 1: bf16 MXU dot, fp32 accumulate; bias-add/ReLU in fp32 (v5e-friendly).
    x = x_ref[...].astype(jnp.bfloat16)
    h1 = jnp.dot(x, w1_ref[...], preferred_element_type=jnp.float32)
    h1 = jnp.maximum(h1 + b1_ref[...], 0.0)
    # Layer 2
    h2 = jnp.dot(h1.astype(jnp.bfloat16), w2_ref[...],
                 preferred_element_type=jnp.float32)
    h2 = jnp.maximum(h2 + b2_ref[...], 0.0)
    # Layer 3 (output padded to a lane-dense 128-multiple slab), stored as bf16.
    out = jnp.dot(h2.astype(jnp.bfloat16), w3_ref[...],
                  preferred_element_type=jnp.float32)
    o_ref[...] = (out + b3_ref[...]).astype(o_ref.dtype)


def prepare_params(params):
    """One-time TPU-native operand prep: bf16 weights, fp32 biases, lane-padded
    final layer. Do this once outside the forward path (hoisted per perf review)."""
    w1, b1, w2, b2, w3, b3 = params
    out_dim = w3.shape[1]
    out_pad = _round_up(out_dim, LANE)
    w1b = w1.astype(jnp.bfloat16)
    w2b = w2.astype(jnp.bfloat16)
    w3b = jnp.pad(w3, ((0, 0), (0, out_pad - out_dim))).astype(jnp.bfloat16)
    b3p = jnp.pad(b3, ((0, 0), (0, out_pad - out_dim))).astype(jnp.float32)
    return (w1b, b1.astype(jnp.float32), w2b, b2.astype(jnp.float32), w3b, b3p,
            out_dim)


def _choose_tb(B: int) -> int:
    """Batch-tile heuristic:
       - B <= 512: one grid step (resident weights -> nothing to pipeline; avoid
         paying ~0.35us/step overhead on a few-us kernel).
       - large B: ~512-1024-row tiles with >= 2 steps so v7x can shard across its
         2 TensorCores; tb = round_up(cdiv(B, n_tiles), 8) keeps pad waste < 8 rows
         per tile instead of up to tb-1 rows."""
    if B <= 512:
        return _round_up(max(B, SUBLANE), SUBLANE)
    n_tiles = max(2, _cdiv(B, 1024))
    return _round_up(_cdiv(B, n_tiles), SUBLANE)


def network_forward(x, prepped_params, *, tb=None):
    """Full 3-layer MLP in one pallas_call; streams x/out over a batch grid while
    all weights stay resident in VMEM. Returns f32 (B, out_dim)."""
    w1b, b1, w2b, b2, w3b, b3p, out_dim = prepped_params
    B, in_dim = x.shape
    out_pad = w3b.shape[1]

    # ---- batch tiling ----
    tb = _choose_tb(B) if tb is None else _round_up(tb, SUBLANE)
    n_tiles = _cdiv(B, tb)
    padded_B = n_tiles * tb
    if padded_B != B:
        x = jnp.pad(x, ((0, padded_B - B), (0, 0)))
    grid = (n_tiles,)

    # Weights/biases: full block, constant index_map -> resident in VMEM across grid.
    resident = lambda shape: pl.BlockSpec(shape, lambda i: (0,) * len(shape))

    flops = 2 * padded_B * (in_dim * HIDDEN + HIDDEN * HIDDEN + HIDDEN * out_pad)
    bytes_accessed = (
        padded_B * in_dim * 4                           # x (fp32 in HBM)
        + w1b.size * 2 + w2b.size * 2 + w3b.size * 2    # bf16 weights
        + b1.size * 4 + b2.size * 4 + b3p.size * 4      # fp32 biases
        + padded_B * out_pad * 2                        # bf16 output slab
    )

    out_padded = pl.pallas_call(
        mlp_kernel,
        out_shape=jax.ShapeDtypeStruct((padded_B, out_pad), jnp.bfloat16),
        grid=grid,
        in_specs=[
            pl.BlockSpec((tb, in_dim), lambda i: (i, 0)),  # x streams over batch tiles
            resident(w1b.shape),
            resident(b1.shape),
            resident(w2b.shape),
            resident(b2.shape),
            resident(w3b.shape),
            resident(b3p.shape),
        ],
        out_specs=pl.BlockSpec((tb, out_pad), lambda i: (i, 0)),
        compiler_params=pltpu.CompilerParams(
            dimension_semantics=("parallel",),  # shard batch tiles across v7x's 2 TCs
        ),
        cost_estimate=pl.CostEstimate(
            flops=flops, transcendentals=0, bytes_accessed=bytes_accessed
        ),
    )(x, w1b, b1, w2b, b2, w3b, b3p)

    # Strip batch/lane padding and restore f32 in plain JAX (tiny (B, out_dim) op).
    return out_padded[:B, :out_dim].astype(jnp.float32)


def init_params(key, in_dim, out_dim):
    """Deterministic synthetic init (PyTorch-Linear-like uniform bounds), fp32."""
    ks = jax.random.split(key, 6)

    def linear_init(kw, kb, fan_in, fan_out):
        bound = 1.0 / jnp.sqrt(fan_in)
        # stored as (fan_in, fan_out) == W.T relative to PyTorch
        w = jax.random.uniform(kw, (fan_in, fan_out), jnp.float32, -bound, bound)
        b = jax.random.uniform(kb, (1, fan_out), jnp.float32, -bound, bound)
        return w, b

    w1, b1 = linear_init(ks[0], ks[1], in_dim, HIDDEN)
    w2, b2 = linear_init(ks[2], ks[3], HIDDEN, HIDDEN)
    w3, b3 = linear_init(ks[4], ks[5], HIDDEN, out_dim)
    return (w1, b1, w2, b2, w3, b3)


def reference_forward(x, params, compute_dtype=jnp.float32):
    """Pure-JAX reference. compute_dtype=bf16 mirrors the kernel's MXU numerics."""
    w1, b1, w2, b2, w3, b3 = params
    c = lambda a: a.astype(compute_dtype)
    h1 = jnp.maximum(
        jnp.dot(c(x), c(w1), preferred_element_type=jnp.float32) + b1, 0.0)
    h2 = jnp.maximum(
        jnp.dot(c(h1), c(w2), preferred_element_type=jnp.float32) + b2, 0.0)
    return jnp.dot(c(h2), c(w3), preferred_element_type=jnp.float32) + b3


if __name__ == "__main__":
    key = jax.random.PRNGKey(0)
    k_x, k_p = jax.random.split(key)

    # Small DQN-style shapes consistent with the module.
    batch, in_dim, out_dim = 48, 32, 4
    x = jax.random.normal(k_x, (batch, in_dim), dtype=jnp.float32)
    params = init_params(k_p, in_dim, out_dim)
    prepped = prepare_params(params)   # one-time weight cast/pad, hoisted off hot path

    y_ref_bf16 = reference_forward(x, params, compute_dtype=jnp.bfloat16)
    y_ref_f32 = reference_forward(x, params, compute_dtype=jnp.float32)

    # Default path: single grid step (B <= 512), resident weights, bf16 output slab.
    y = jax.block_until_ready(network_forward(x, prepped))
    assert y.shape == (batch, out_dim)
    assert jnp.allclose(y, y_ref_bf16, atol=2e-2, rtol=2e-2), "mismatch vs bf16 reference"
    assert jnp.allclose(y, y_ref_f32, atol=5e-2, rtol=5e-2), "mismatch vs fp32 reference"

    # Multi-tile path check: tb=16 -> grid=(3,), exercises batch streaming + residency.
    y_multi = jax.block_until_ready(network_forward(x, prepped, tb=16))
    assert y_multi.shape == (batch, out_dim)
    assert jnp.allclose(y_multi, y_ref_bf16, atol=2e-2, rtol=2e-2), "multi-tile mismatch"

    print("KERNEL_OK")
</pallas_src>

<mosaic_0001>
module attributes {stable_mosaic.version = 11 : i64} {
  func.func @mlp_kernel(%arg0: i32, %arg1: memref<48x32xf32, #tpu.memory_space<vmem>>, %arg2: memref<32x128xbf16, #tpu.memory_space<vmem>>, %arg3: memref<1x128xf32, #tpu.memory_space<vmem>>, %arg4: memref<128x128xbf16, #tpu.memory_space<vmem>>, %arg5: memref<1x128xf32, #tpu.memory_space<vmem>>, %arg6: memref<128x128xbf16, #tpu.memory_space<vmem>>, %arg7: memref<1x128xf32, #tpu.memory_space<vmem>>, %arg8: memref<48x128xbf16, #tpu.memory_space<vmem>>) attributes {dimension_semantics = [#tpu.dimension_semantics<parallel>], iteration_bounds = array<i64: 1>, scalar_prefetch = 0 : i64, scratch_operands = 0 : i64, tpu.core_type = #tpu.core_type<tc>, window_params = [{transform_indices = @transform_0, window_bounds = array<i64: 48, 32>}, {pipeline_mode = #tpu.pipeline_mode<synchronous>, transform_indices = @transform_1, window_bounds = array<i64: 32, 128>}, {pipeline_mode = #tpu.pipeline_mode<synchronous>, transform_indices = @transform_2, window_bounds = array<i64: 1, 128>}, {pipeline_mode = #tpu.pipeline_mode<synchronous>, transform_indices = @transform_3, window_bounds = array<i64: 128, 128>}, {pipeline_mode = #tpu.pipeline_mode<synchronous>, transform_indices = @transform_4, window_bounds = array<i64: 1, 128>}, {pipeline_mode = #tpu.pipeline_mode<synchronous>, transform_indices = @transform_5, window_bounds = array<i64: 128, 128>}, {pipeline_mode = #tpu.pipeline_mode<synchronous>, transform_indices = @transform_6, window_bounds = array<i64: 1, 128>}, {transform_indices = @transform_7, window_bounds = array<i64: 48, 128>}]} {
    %c0 = arith.constant 0 : index
    %c0_0 = arith.constant 0 : index
    %0 = vector.load %arg1[%c0, %c0_0] : memref<48x32xf32, #tpu.memory_space<vmem>>, vector<48x32xf32>
    %1 = arith.truncf %0 : vector<48x32xf32> to vector<48x32xbf16>
    %c0_1 = arith.constant 0 : index
    %c0_2 = arith.constant 0 : index
    %2 = vector.load %arg2[%c0_1, %c0_2] : memref<32x128xbf16, #tpu.memory_space<vmem>>, vector<32x128xbf16>
    %cst = arith.constant dense<0.000000e+00> : vector<48x128xf32>
    %3 = tpu.matmul %1, %2, %cst {dimension_numbers = #tpu.dot_dimension_numbers<[1], [0], [0], [1], [0, 0, 1, 1], [], []>} : vector<48x32xbf16>, vector<32x128xbf16>, vector<48x128xf32> -> vector<48x128xf32>
    %c0_3 = arith.constant 0 : index
    %c0_4 = arith.constant 0 : index
    %4 = vector.load %arg3[%c0_3, %c0_4] : memref<1x128xf32, #tpu.memory_space<vmem>>, vector<1x128xf32>
    %5 = vector.broadcast %4 : vector<1x128xf32> to vector<48x128xf32>
    %6 = arith.addf %3, %5 : vector<48x128xf32>
    %cst_5 = arith.constant 0.000000e+00 : f32
    %7 = vector.broadcast %cst_5 : f32 to vector<48x128xf32>
    %8 = arith.maximumf %6, %7 : vector<48x128xf32>
    %9 = arith.truncf %8 : vector<48x128xf32> to vector<48x128xbf16>
    %c0_6 = arith.constant 0 : index
    %c0_7 = arith.constant 0 : index
    %10 = vector.load %arg4[%c0_6, %c0_7] : memref<128x128xbf16, #tpu.memory_space<vmem>>, vector<128x128xbf16>
    %cst_8 = arith.constant dense<0.000000e+00> : vector<48x128xf32>
    %11 = tpu.matmul %9, %10, %cst_8 {dimension_numbers = #tpu.dot_dimension_numbers<[1], [0], [0], [1], [0, 0, 1, 1], [], []>} : vector<48x128xbf16>, vector<128x128xbf16>, vector<48x128xf32> -> vector<48x128xf32>
    %c0_9 = arith.constant 0 : index
    %c0_10 = arith.constant 0 : index
    %12 = vector.load %arg5[%c0_9, %c0_10] : memref<1x128xf32, #tpu.memory_space<vmem>>, vector<1x128xf32>
    %13 = vector.broadcast %12 : vector<1x128xf32> to vector<48x128xf32>
    %14 = arith.addf %11, %13 : vector<48x128xf32>
    %cst_11 = arith.constant 0.000000e+00 : f32
    %15 = vector.broadcast %cst_11 : f32 to vector<48x128xf32>
    %16 = arith.maximumf %14, %15 : vector<48x128xf32>
    %17 = arith.truncf %16 : vector<48x128xf32> to vector<48x128xbf16>
    %c0_12 = arith.constant 0 : index
    %c0_13 = arith.constant 0 : index
    %18 = vector.load %arg6[%c0_12, %c0_13] : memref<128x128xbf16, #tpu.memory_space<vmem>>, vector<128x128xbf16>
    %cst_14 = arith.constant dense<0.000000e+00> : vector<48x128xf32>
    %19 = tpu.matmul %17, %18, %cst_14 {dimension_numbers = #tpu.dot_dimension_numbers<[1], [0], [0], [1], [0, 0, 1, 1], [], []>} : vector<48x128xbf16>, vector<128x128xbf16>, vector<48x128xf32> -> vector<48x128xf32>
    %c0_15 = arith.constant 0 : index
    %c0_16 = arith.constant 0 : index
    %20 = vector.load %arg7[%c0_15, %c0_16] : memref<1x128xf32, #tpu.memory_space<vmem>>, vector<1x128xf32>
    %21 = vector.broadcast %20 : vector<1x128xf32> to vector<48x128xf32>
    %22 = arith.addf %19, %21 : vector<48x128xf32>
    %23 = arith.truncf %22 : vector<48x128xf32> to vector<48x128xbf16>
    %c0_17 = arith.constant 0 : index
    %c0_18 = arith.constant 0 : index
    %24 = vector.load %arg8[%c0_17, %c0_18] : memref<48x128xbf16, #tpu.memory_space<vmem>>, vector<48x128xbf16>
    tpu.vector_store %arg8[%c0_17, %c0_18], %23 {strides = array<i32>} : memref<48x128xbf16, #tpu.memory_space<vmem>>, vector<48x128xbf16>,
    return
  }
  func.func @transform_0(%arg0: i32) -> (i32, i32) {
    %c0_i32 = arith.constant 0 : i32
    %c0_i32_0 = arith.constant 0 : i32
    return %arg0, %c0_i32 : i32, i32
  }
  func.func @transform_1(%arg0: i32) -> (i32, i32) {
    %c0_i32 = arith.constant 0 : i32
    %c0_i32_0 = arith.constant 0 : i32
    %c0_i32_1 = arith.constant 0 : i32
    return %c0_i32, %c0_i32_0 : i32, i32
  }
  func.func @transform_2(%arg0: i32) -> (i32, i32) {
    %c0_i32 = arith.constant 0 : i32
    %c0_i32_0 = arith.constant 0 : i32
    %c0_i32_1 = arith.constant 0 : i32
    return %c0_i32, %c0_i32_0 : i32, i32
  }
  func.func @transform_3(%arg0: i32) -> (i32, i32) {
    %c0_i32 = arith.constant 0 : i32
    %c0_i32_0 = arith.constant 0 : i32
    %c0_i32_1 = arith.constant 0 : i32
    return %c0_i32, %c0_i32_0 : i32, i32
  }
  func.func @transform_4(%arg0: i32) -> (i32, i32) {
    %c0_i32 = arith.constant 0 : i32
    %c0_i32_0 = arith.constant 0 : i32
    %c0_i32_1 = arith.constant 0 : i32
    return %c0_i32, %c0_i32_0 : i32, i32
  }
  func.func @transform_5(%arg0: i32) -> (i32, i32) {
    %c0_i32 = arith.constant 0 : i32
    %c0_i32_0 = arith.constant 0 : i32
    %c0_i32_1 = arith.constant 0 : i32
    return %c0_i32, %c0_i32_0 : i32, i32
  }
  func.func @transform_6(%arg0: i32) -> (i32, i32) {
    %c0_i32 = arith.constant 0 : i32
    %c0_i32_0 = arith.constant 0 : i32
    %c0_i32_1 = arith.constant 0 : i32
    return %c0_i32, %c0_i32_0 : i32, i32
  }
  func.func @transform_7(%arg0: i32) -> (i32, i32) {
    %c0_i32 = arith.constant 0 : i32
    %c0_i32_0 = arith.constant 0 : i32
    return %arg0, %c0_i32 : i32, i32
  }
}

</mosaic_0001>

<llo_original>
// kernel: tpu_custom_call.1
$region0: #{tpu_custom_call.1}
  #allocation0 [shape = 'u32[]', space=smem, size = 0x4, offset = 0x4, fixed_abs, tag = 'smem constant byte address 0x4 - core index']
  #allocation1 [shape = 'u32[144,128]{1,0:T(1,128)}', space=vmem, size = 0x12000, scoped, tag = 'internal scratch']
  %s0 = inlined_call_operand.vmem [shape: f32[48,32], index: 0, kind: input, shape index: {}]
  %s1 = inlined_call_operand.vmem [shape: bf16[32,128], index: 1, kind: input, shape index: {}]
  %s2 = inlined_call_operand.vmem [shape: f32[1,128], index: 2, kind: input, shape index: {}]
  %s3 = inlined_call_operand.vmem [shape: bf16[128,128], index: 3, kind: input, shape index: {}]
  %s4 = inlined_call_operand.vmem [shape: f32[1,128], index: 4, kind: input, shape index: {}]
  %s5 = inlined_call_operand.hbm [shape: bf16[128,128], index: 5, kind: input, shape index: {}]
  %s6 = inlined_call_operand.vmem [shape: f32[1,128], index: 6, kind: input, shape index: {}]
  %s7 = inlined_call_operand.hbm [shape: bf16[48,128], index: 7, kind: output, shape index: {}]
  %s8 = sld [smem:[#allocation0]]
  $region42: #{tpu_custom_call.1} parent=0
    _
  %s10 = ssub.s32 1, %s8
  %s11 = scalar_select 0, %s10, %s8
  $region1: #{tpu_custom_call.1} parent=0
    #allocation2 [shape = 'u8[32768]{0}', space=vmem, size = 0x8000, scoped, tag = 'input window, operand 5, single buffered']
    #allocation3 [shape = 's32[1]{0}', space=sflag, size = 0x4, scoped, tag = 'scoped memory for tpu_custom_call.1']
    #allocation4 [shape = 's32[1]{0}', space=sflag, size = 0x4, scoped, tag = 'scoped memory for tpu_custom_call.1']
    #allocation5 [shape = 'u8[12288]{0}', space=vmem, size = 0x3000, scoped, tag = 'output window, operand 0, single buffered']
    %12 = vsyncpa [#allocation3], 0
    %13 = vsyncpa [#allocation4], 0
    // Predicated region
    $region2: #{tpu_custom_call.1} parent=1 // pred_check
      _
    $region3: #{tpu_custom_call.1} parent=1 // pred_check_branch
      %15 = sbr.rel (0) target = $region5
    $region4: #{tpu_custom_call.1} parent=1 // pred_region
      _
    $region5: #{tpu_custom_call.1} parent=1 // pred_fallthru
      _
    // Predicated region
    $region6: #{tpu_custom_call.1} parent=1 // pred_check
      _
    $region7: #{tpu_custom_call.1} parent=1 // pred_check_branch
      %17 = sbr.rel (0) target = $region9
    $region8: #{tpu_custom_call.1} parent=1 // pred_region
      _
    $region9: #{tpu_custom_call.1} parent=1 // pred_fallthru
      _
    // Predicated region
    $region10: #{tpu_custom_call.1} parent=1 // pred_check
      _
    $region11: #{tpu_custom_call.1} parent=1 // pred_check_branch
      %19 = sbr.rel (0) target = $region13
    $region12: #{tpu_custom_call.1} parent=1 // pred_region
      _
    $region13: #{tpu_custom_call.1} parent=1 // pred_fallthru
      _
    // Predicated region
    $region14: #{tpu_custom_call.1} parent=1 // pred_check
      _
    $region15: #{tpu_custom_call.1} parent=1 // pred_check_branch
      %21 = sbr.rel (0) target = $region17
    $region16: #{tpu_custom_call.1} parent=1 // pred_region
      _
    $region17: #{tpu_custom_call.1} parent=1 // pred_fallthru
      _
    // Predicated region
    $region18: #{tpu_custom_call.1} parent=1 // pred_check
      _
    $region19: #{tpu_custom_call.1} parent=1 // pred_check_branch
      %23 = sbr.rel (0) target = $region21
    $region20: #{tpu_custom_call.1} parent=1 // pred_region
      _
    $region21: #{tpu_custom_call.1} parent=1 // pred_fallthru
      _
    // Predicated region
    $region22: #{tpu_custom_call.1} parent=1 // pred_check
      _
    $region23: #{tpu_custom_call.1} parent=1 // pred_check_branch
      %25 = sbr.rel (0) target = $region25
    $region24: #{tpu_custom_call.1} parent=1 // pred_region
      %s27 = ssub.s32 1024, 1024
      %28 = vsyncadd [#allocation3], %s27
      %s29 = sshll.u32 [#allocation2], 4
      %s30 = int_to_ptr.vmem [resolvable:$true] %s29
      %35 = dma.hbm_to_vmem [thread:$0]  %s5, 1024, %s30, [#allocation3], 64, 64, 4
    $region25: #{tpu_custom_call.1} parent=1 // pred_fallthru
      _
    // Predicated region
    $region26: #{tpu_custom_call.1} parent=1 // pred_check
      _
    $region27: #{tpu_custom_call.1} parent=1 // pred_check_branch
      %37 = sbr.rel (0) target = $region29
    $region28: #{tpu_custom_call.1} parent=1 // pred_region
      _
    $region29: #{tpu_custom_call.1} parent=1 // pred_fallthru
      _
    // Predicated region
    $region30: #{tpu_custom_call.1} parent=1 // pred_check
      _
    $region31: #{tpu_custom_call.1} parent=1 // pred_check_branch
      %39 = sbr.rel (0) target = $region33
    $region32: #{tpu_custom_call.1} parent=1 // pred_region
      %40 = dma.done [#allocation3], 1024
    $region33: #{tpu_custom_call.1} parent=1 // pred_fallthru
      _
    %v42 = vld [vmem:[%s0] sm:$0xff]
    %v43 = vld [vmem:[%s0 + $0x8] sm:$0xff]
    %v44 = vld [vmem:[%s0 + $0x10] sm:$0xff]
    %v45 = vld [vmem:[%s0 + $0x18] sm:$0xff]
    %v46 = vld [vmem:[%s0 + $0x20] sm:$0xff]
    %v47 = vld [vmem:[%s0 + $0x28] sm:$0xff]
    %v48 = vpack.c.bf16 %v43, %v42
    %v49 = vpack.c.bf16 %v45, %v44
    %v50 = vpack.c.bf16 %v47, %v46
    %v51 = vld [vmem:[%s1] sm:$0xf]
    %v52 = vld [vmem:[%s1 + $0x4] sm:$0xf]
    %v53 = vld [vmem:[%s1 + $0x8] sm:$0xf]
    %v54 = vld [vmem:[%s1 + $0xc] sm:$0xf]
    %v55 = vld [vmem:[%s2] sm:$0x1]
    %v57 = vlaneseq
    %v58 = vshrl.u32 %v57, 7
    %v59 = vsub.s32 0, %v58
    %v60 = vrot.slane %v55, %v59
    %v66 = vunpack.c.l.b16 %v51
    %v67 = vunpack.c.l.b16 %v52
    %v68 = vunpack.c.l.b16 %v53
    %v69 = vunpack.c.l.b16 %v54
    %v70 = vpack.c.b16 %v67, %v66
    %v71 = vpack.c.b16 %v69, %v68
    %vm74 = vcmask 261120
    %v76 = vsel %vm74, %v48, 0
    %v79 = vsel %vm74, %v49, 0
    %v82 = vsel %vm74, %v50, 0
    %84 = vmatprep.subr.bf16.mxu0 0
    %85 = vmatpush1.bf16.msra.mxu0 0
    %86 = vmatprep.subr.bf16.mxu0 0
    %87 = vmatpush1.bf16.msra.mxu0 0
    %88 = vmatprep.subr.bf16.mxu0 0
    %89 = vmatpush1.bf16.msra.mxu0 0
    %90 = vmatprep.subr.bf16.mxu0 0
    %91 = vmatpush1.bf16.msra.mxu0 0
    %92 = vmatprep.subr.bf16.mxu0 0
    %93 = vmatpush1.bf16.msra.mxu0 0
    %94 = vmatprep.subr.bf16.mxu0 0
    %95 = vmatpush1.bf16.msra.mxu0 0
    %96 = vmatprep.subr.bf16.mxu0 0
    %97 = vmatpush1.bf16.msra.mxu0 %v71
    %98 = vmatprep.subr.bf16.mxu0 0
    %99 = vmatpush1.bf16.msra.mxu0 %v70
    %100 = vmatprep.subr.bf16.mxu0 0
    %101 = vmatpush2.bf16.msra.mxu0 0
    %102 = vmatprep.subr.bf16.mxu0 0
    %103 = vmatpush2.bf16.msra.mxu0 0
    %104 = vmatprep.subr.bf16.mxu0 0
    %105 = vmatpush2.bf16.msra.mxu0 0
    %106 = vmatprep.subr.bf16.mxu0 0
    %107 = vmatpush2.bf16.msra.mxu0 0
    %108 = vmatprep.subr.bf16.mxu0 0
    %109 = vmatpush2.bf16.msra.mxu0 0
    %110 = vmatprep.subr.bf16.mxu0 0
    %111 = vmatpush2.bf16.msra.mxu0 0
    %112 = vmatprep.subr.bf16.mxu0 0
    %113 = vmatpush2.bf16.msra.mxu0 0
    %114 = vmatprep.subr.bf16.mxu0 0
    %115 = vmatpush2.bf16.msra.mxu0 0
    %116 = vmatprep.mubr.bf16.mxu0 0
    %117 = vmatmul.mubr.bf16.gmra.mxu0 %v76
    %v118 = vpop.f32.mrf.mxu0
    %v119 = vadd.f32 %v60, %v118
    %v120 = vpop.f32.mrf.mxu0
    %v121 = vpop.f32.mrf.mxu0
    %v122 = vadd.f32 %v60, %v121
    %v123 = vpop.f32.mrf.mxu0
    %124 = vmatprep.mubr.bf16.mxu0 0
    %125 = vmatmul.mubr.bf16.gmra.mxu0 %v79
    %v126 = vpop.f32.mrf.mxu0
    %v127 = vadd.f32 %v60, %v126
    %v128 = vpop.f32.mrf.mxu0
    %v129 = vpop.f32.mrf.mxu0
    %v130 = vadd.f32 %v60, %v129
    %v131 = vpop.f32.mrf.mxu0
    %132 = vmatprep.mubr.bf16.mxu0 0
    %133 = vmatmul.mubr.bf16.gmra.mxu0 %v82
    %v134 = vpop.f32.mrf.mxu0
    %v135 = vadd.f32 %v60, %v134
    %v136 = vpop.f32.mrf.mxu0
    %v137 = vpop.f32.mrf.mxu0
    %v138 = vadd.f32 %v60, %v137
    %v139 = vpop.f32.mrf.mxu0
    %140 = vdwg.mxu0
    %v141 = vmax.f32 %v119, 0.0
    %v142 = vmax.f32 %v122, 0.0
    %v143 = vmax.f32 %v127, 0.0
    %v144 = vmax.f32 %v130, 0.0
    %v145 = vmax.f32 %v135, 0.0
    %v146 = vmax.f32 %v138, 0.0
    %v147 = vpack.c.bf16 %v142, %v141
    %v148 = vpack.c.bf16 %v144, %v143
    %v149 = vpack.c.bf16 %v146, %v145
    %v150 = vld [vmem:[%s3] sm:$0xf]
    %v151 = vld [vmem:[%s3 + $0x4] sm:$0xf]
    %v152 = vld [vmem:[%s3 + $0x8] sm:$0xf]
    %v153 = vld [vmem:[%s3 + $0xc] sm:$0xf]
    %v154 = vld [vmem:[%s3 + $0x10] sm:$0xf]
    %v155 = vld [vmem:[%s3 + $0x14] sm:$0xf]
    %v156 = vld [vmem:[%s3 + $0x18] sm:$0xf]
    %v157 = vld [vmem:[%s3 + $0x1c] sm:$0xf]
    %v158 = vld [vmem:[%s3 + $0x20] sm:$0xf]
    %v159 = vld [vmem:[%s3 + $0x24] sm:$0xf]
    %v160 = vld [vmem:[%s3 + $0x28] sm:$0xf]
    %v161 = vld [vmem:[%s3 + $0x2c] sm:$0xf]
    %v162 = vld [vmem:[%s3 + $0x30] sm:$0xf]
    %v163 = vld [vmem:[%s3 + $0x34] sm:$0xf]
    %v164 = vld [vmem:[%s3 + $0x38] sm:$0xf]
    %v165 = vld [vmem:[%s3 + $0x3c] sm:$0xf]
    %v166 = vld [vmem:[%s4] sm:$0x1]
    %v168 = vlaneseq
    %v169 = vshrl.u32 %v168, 7
    %v170 = vsub.s32 0, %v169
    %v171 = vrot.slane %v166, %v170
    %v189 = vunpack.c.l.b16 %v150
    %v190 = vunpack.c.l.b16 %v151
    %v191 = vunpack.c.l.b16 %v152
    %v192 = vunpack.c.l.b16 %v153
    %v193 = vunpack.c.l.b16 %v154
    %v194 = vunpack.c.l.b16 %v155
    %v195 = vunpack.c.l.b16 %v156
    %v196 = vunpack.c.l.b16 %v157
    %v197 = vunpack.c.l.b16 %v158
    %v198 = vunpack.c.l.b16 %v159
    %v199 = vunpack.c.l.b16 %v160
    %v200 = vunpack.c.l.b16 %v161
    %v201 = vunpack.c.l.b16 %v162
    %v202 = vunpack.c.l.b16 %v163
    %v203 = vunpack.c.l.b16 %v164
    %v204 = vunpack.c.l.b16 %v165
    %v205 = vpack.c.b16 %v190, %v189
    %v206 = vpack.c.b16 %v192, %v191
    %v207 = vpack.c.b16 %v194, %v193
    %v208 = vpack.c.b16 %v196, %v195
    %v209 = vpack.c.b16 %v198, %v197
    %v210 = vpack.c.b16 %v200, %v199
    %v211 = vpack.c.b16 %v202, %v201
    %v212 = vpack.c.b16 %v204, %v203
    %221 = vmatprep.subr.bf16.mxu0 0
    %222 = vmatpush1.bf16.msra.mxu0 %v212
    %223 = vmatprep.subr.bf16.mxu0 0
    %224 = vmatpush1.bf16.msra.mxu0 %v211
    %225 = vmatprep.subr.bf16.mxu0 0
    %226 = vmatpush1.bf16.msra.mxu0 %v210
    %227 = vmatprep.subr.bf16.mxu0 0
    %228 = vmatpush1.bf16.msra.mxu0 %v209
    %229 = vmatprep.subr.bf16.mxu0 0
    %230 = vmatpush1.bf16.msra.mxu0 %v208
    %231 = vmatprep.subr.bf16.mxu0 0
    %232 = vmatpush1.bf16.msra.mxu0 %v207
    %233 = vmatprep.subr.bf16.mxu0 0
    %234 = vmatpush1.bf16.msra.mxu0 %v206
    %235 = vmatprep.subr.bf16.mxu0 0
    %236 = vmatpush1.bf16.msra.mxu0 %v205
    %237 = vmatprep.subr.bf16.mxu0 0
    %238 = vmatpush2.bf16.msra.mxu0 0
    %239 = vmatprep.subr.bf16.mxu0 0
    %240 = vmatpush2.bf16.msra.mxu0 0
    %241 = vmatprep.subr.bf16.mxu0 0
    %242 = vmatpush2.bf16.msra.mxu0 0
    %243 = vmatprep.subr.bf16.mxu0 0
    %244 = vmatpush2.bf16.msra.mxu0 0
    %245 = vmatprep.subr.bf16.mxu0 0
    %246 = vmatpush2.bf16.msra.mxu0 0
    %247 = vmatprep.subr.bf16.mxu0 0
    %248 = vmatpush2.bf16.msra.mxu0 0
    %249 = vmatprep.subr.bf16.mxu0 0
    %250 = vmatpush2.bf16.msra.mxu0 0
    %251 = vmatprep.subr.bf16.mxu0 0
    %252 = vmatpush2.bf16.msra.mxu0 0
    %253 = vmatprep.mubr.bf16.mxu0 0
    %254 = vmatmul.mubr.bf16.gmra.mxu0 %v147
    %v255 = vpop.f32.mrf.mxu0
    %v256 = vadd.f32 %v171, %v255
    %v257 = vpop.f32.mrf.mxu0
    %v258 = vpop.f32.mrf.mxu0
    %v259 = vadd.f32 %v171, %v258
    %v260 = vpop.f32.mrf.mxu0
    %261 = vmatprep.mubr.bf16.mxu0 0
    %262 = vmatmul.mubr.bf16.gmra.mxu0 %v148
    %v263 = vpop.f32.mrf.mxu0
    %v264 = vadd.f32 %v171, %v263
    %v265 = vpop.f32.mrf.mxu0
    %v266 = vpop.f32.mrf.mxu0
    %v267 = vadd.f32 %v171, %v266
    %v268 = vpop.f32.mrf.mxu0
    %269 = vmatprep.mubr.bf16.mxu0 0
    %270 = vmatmul.mubr.bf16.gmra.mxu0 %v149
    %v271 = vpop.f32.mrf.mxu0
    %v272 = vadd.f32 %v171, %v271
    %v273 = vpop.f32.mrf.mxu0
    %v274 = vpop.f32.mrf.mxu0
    %v275 = vadd.f32 %v171, %v274
    %v276 = vpop.f32.mrf.mxu0
    %277 = vdwg.mxu0
    %v278 = vmax.f32 %v256, 0.0
    %v279 = vmax.f32 %v259, 0.0
    %v280 = vmax.f32 %v264, 0.0
    %v281 = vmax.f32 %v267, 0.0
    %v282 = vmax.f32 %v272, 0.0
    %v283 = vmax.f32 %v275, 0.0
    %v284 = vpack.c.bf16 %v279, %v278
    %v285 = vpack.c.bf16 %v281, %v280
    %v286 = vpack.c.bf16 %v283, %v282
    %v287 = vld [vmem:[#allocation2] sm:$0xf]
    %v288 = vld [vmem:[#allocation2 + $0x4] sm:$0xf]
    %v289 = vld [vmem:[#allocation2 + $0x8] sm:$0xf]
    %v290 = vld [vmem:[#allocation2 + $0xc] sm:$0xf]
    %v291 = vld [vmem:[#allocation2 + $0x10] sm:$0xf]
    %v292 = vld [vmem:[#allocation2 + $0x14] sm:$0xf]
    %v293 = vld [vmem:[#allocation2 + $0x18] sm:$0xf]
    %v294 = vld [vmem:[#allocation2 + $0x1c] sm:$0xf]
    %v295 = vld [vmem:[#allocation2 + $0x20] sm:$0xf]
    %v296 = vld [vmem:[#allocation2 + $0x24] sm:$0xf]
    %v297 = vld [vmem:[#allocation2 + $0x28] sm:$0xf]
    %v298 = vld [vmem:[#allocation2 + $0x2c] sm:$0xf]
    %v299 = vld [vmem:[#allocation2 + $0x30] sm:$0xf]
    %v300 = vld [vmem:[#allocation2 + $0x34] sm:$0xf]
    %v301 = vld [vmem:[#allocation2 + $0x38] sm:$0xf]
    %v302 = vld [vmem:[#allocation2 + $0x3c] sm:$0xf]
    %v303 = vld [vmem:[%s6] sm:$0x1]
    %v305 = vlaneseq
    %v306 = vshrl.u32 %v305, 7
    %v307 = vsub.s32 0, %v306
    %v308 = vrot.slane %v303, %v307
    %v326 = vunpack.c.l.b16 %v287
    %v327 = vunpack.c.l.b16 %v288
    %v328 = vunpack.c.l.b16 %v289
    %v329 = vunpack.c.l.b16 %v290
    %v330 = vunpack.c.l.b16 %v291
    %v331 = vunpack.c.l.b16 %v292
    %v332 = vunpack.c.l.b16 %v293
    %v333 = vunpack.c.l.b16 %v294
    %v334 = vunpack.c.l.b16 %v295
    %v335 = vunpack.c.l.b16 %v296
    %v336 = vunpack.c.l.b16 %v297
    %v337 = vunpack.c.l.b16 %v298
    %v338 = vunpack.c.l.b16 %v299
    %v339 = vunpack.c.l.b16 %v300
    %v340 = vunpack.c.l.b16 %v301
    %v341 = vunpack.c.l.b16 %v302
    %v342 = vpack.c.b16 %v327, %v326
    %v343 = vpack.c.b16 %v329, %v328
    %v344 = vpack.c.b16 %v331, %v330
    %v345 = vpack.c.b16 %v333, %v332
    %v346 = vpack.c.b16 %v335, %v334
    %v347 = vpack.c.b16 %v337, %v336
    %v348 = vpack.c.b16 %v339, %v338
    %v349 = vpack.c.b16 %v341, %v340
    %358 = vmatprep.subr.bf16.mxu0 0
    %359 = vmatpush1.bf16.msra.mxu0 %v349
    %360 = vmatprep.subr.bf16.mxu0 0
    %361 = vmatpush1.bf16.msra.mxu0 %v348
    %362 = vmatprep.subr.bf16.mxu0 0
    %363 = vmatpush1.bf16.msra.mxu0 %v347
    %364 = vmatprep.subr.bf16.mxu0 0
    %365 = vmatpush1.bf16.msra.mxu0 %v346
    %366 = vmatprep.subr.bf16.mxu0 0
    %367 = vmatpush1.bf16.msra.mxu0 %v345
    %368 = vmatprep.subr.bf16.mxu0 0
    %369 = vmatpush1.bf16.msra.mxu0 %v344
    %370 = vmatprep.subr.bf16.mxu0 0
    %371 = vmatpush1.bf16.msra.mxu0 %v343
    %372 = vmatprep.subr.bf16.mxu0 0
    %373 = vmatpush1.bf16.msra.mxu0 %v342
    %374 = vmatprep.subr.bf16.mxu0 0
    %375 = vmatpush2.bf16.msra.mxu0 0
    %376 = vmatprep.subr.bf16.mxu0 0
    %377 = vmatpush2.bf16.msra.mxu0 0
    %378 = vmatprep.subr.bf16.mxu0 0
    %379 = vmatpush2.bf16.msra.mxu0 0
    %380 = vmatprep.subr.bf16.mxu0 0
    %381 = vmatpush2.bf16.msra.mxu0 0
    %382 = vmatprep.subr.bf16.mxu0 0
    %383 = vmatpush2.bf16.msra.mxu0 0
    %384 = vmatprep.subr.bf16.mxu0 0
    %385 = vmatpush2.bf16.msra.mxu0 0
    %386 = vmatprep.subr.bf16.mxu0 0
    %387 = vmatpush2.bf16.msra.mxu0 0
    %388 = vmatprep.subr.bf16.mxu0 0
    %389 = vmatpush2.bf16.msra.mxu0 0
    %390 = vmatprep.mubr.bf16.mxu0 0
    %391 = vmatmul.mubr.bf16.gmra.mxu0 %v284
    %v392 = vpop.f32.mrf.mxu0
    %v393 = vadd.f32 %v308, %v392
    %v394 = vpop.f32.mrf.mxu0
    %v395 = vpop.f32.mrf.mxu0
    %v396 = vadd.f32 %v308, %v395
    %v397 = vpop.f32.mrf.mxu0
    %398 = vmatprep.mubr.bf16.mxu0 0
    %399 = vmatmul.mubr.bf16.gmra.mxu0 %v285
    %v400 = vpop.f32.mrf.mxu0
    %v401 = vadd.f32 %v308, %v400
    %v402 = vpop.f32.mrf.mxu0
    %v403 = vpop.f32.mrf.mxu0
    %v404 = vadd.f32 %v308, %v403
    %v405 = vpop.f32.mrf.mxu0
    %406 = vmatprep.mubr.bf16.mxu0 0
    %407 = vmatmul.mubr.bf16.gmra.mxu0 %v286
    %v408 = vpop.f32.mrf.mxu0
    %v409 = vadd.f32 %v308, %v408
    %v410 = vpop.f32.mrf.mxu0
    %v411 = vpop.f32.mrf.mxu0
    %v412 = vadd.f32 %v308, %v411
    %v413 = vpop.f32.mrf.mxu0
    %414 = vdwg.mxu0
    %v415 = vpack.c.bf16 %v396, %v393
    %v416 = vpack.c.bf16 %v404, %v401
    %v417 = vpack.c.bf16 %v412, %v409
    %v421 = vunpack.c.l.b16 %v415
    %v422 = vunpack.c.h.b16 %v415
    %v423 = vunpack.c.l.b16 %v416
    %v424 = vunpack.c.h.b16 %v416
    %v425 = vunpack.c.l.b16 %v417
    %v426 = vunpack.c.h.b16 %v417
    %v427 = vpack.c.b16 %v421, %v421
    %v428 = vpack.c.b16 %v422, %v422
    %v429 = vpack.c.b16 %v423, %v423
    %v430 = vpack.c.b16 %v424, %v424
    %v431 = vpack.c.b16 %v425, %v425
    %v432 = vpack.c.b16 %v426, %v426
    %439 = vst [vmem:[#allocation5] sm:$0xf] %v427
    %440 = vst [vmem:[#allocation5 + $0x4] sm:$0xf] %v428
    %441 = vst [vmem:[#allocation5 + $0x8] sm:$0xf] %v429
    %442 = vst [vmem:[#allocation5 + $0xc] sm:$0xf] %v430
    %443 = vst [vmem:[#allocation5 + $0x10] sm:$0xf] %v431
    %444 = vst [vmem:[#allocation5 + $0x14] sm:$0xf] %v432
    // Predicated region
    $region34: #{tpu_custom_call.1} parent=1 // pred_check
      _
    $region35: #{tpu_custom_call.1} parent=1 // pred_check_branch
      %446 = sbr.rel (0) target = $region37
    $region36: #{tpu_custom_call.1} parent=1 // pred_region
      %s448 = ssub.s32 384, 384
      %449 = vsyncadd [#allocation4], %s448
      %s450 = sshll.u32 [#allocation5], 4
      %s451 = int_to_ptr.vmem [resolvable:$true] %s450
      %456 = dma.vmem_to_hbm [thread:$0]  %s451, 384, %s7, [#allocation4], 64, 64, 4
    $region37: #{tpu_custom_call.1} parent=1 // pred_fallthru
      _
    // Predicated region
    $region38: #{tpu_custom_call.1} parent=1 // pred_check
      _
    $region39: #{tpu_custom_call.1} parent=1 // pred_check_branch
      %458 = sbr.rel (0) target = $region41
    $region40: #{tpu_custom_call.1} parent=1 // pred_region
      %459 = dma.done [#allocation4], 384
    $region41: #{tpu_custom_call.1} parent=1 // pred_fallthru
      _
    %460 = vsyncpa [#allocation3], 1
    %461 = vsyncpa [#allocation4], 1

</llo_original>
